<compile_context>
chip_gen: v7x
topology: tpu7x:2x2x1
jax: 0.10.0
libtpu: 0.0.40
codegen_flags: <defaults>
</compile_context>

<pallas_src>
import functools

import jax
import jax.numpy as jnp
from jax.experimental import pallas as pl
from jax.experimental.pallas import tpu as pltpu

_EPS = 1e-5  # torch.nn.GroupNorm default eps


def _gelu_exact(x):
    # PyTorch nn.GELU() default: exact erf-based GELU (computed in f32).
    return 0.5 * x * (1.0 + jax.lax.erf(x * 0.7071067811865476))


def _groupnorm1(h, gamma, beta):
    # GroupNorm(num_groups=1): normalize over ALL (C, L) elements of one
    # sample, then per-channel affine.  h is (C, L) f32; gamma/beta are (C, 1).
    # One-pass statistics: var = E[h^2] - E[h]^2 (single cross-lane reduction
    # sweep instead of two).
    inv_n = 1.0 / h.size
    s = jnp.sum(h)
    ss = jnp.sum(h * h)
    mean = s * inv_n
    var = jnp.maximum(ss * inv_n - mean * mean, 0.0)
    scale = jax.lax.rsqrt(var + _EPS)
    return (h - mean) * scale * gamma + beta


def resconv_kernel(x_ref,
                   wf_ref, bf_ref,            # fused [conv_1 ; pad ; conv_skip]
                   g1_ref, be1_ref,           # group_norm_1 affine
                   w2_ref, b2_ref,            # conv_2
                   g2_ref, be2_ref,           # group_norm_2 affine
                   o_ref,
                   *, c_mid, c_mid_pad):
    # One grid step == one batch element. x_ref block: (1, C_in, L).
    x = x_ref[0]                                           # (C_in, L)

    # Fused conv_1 + conv_skip: one MXU pass over x, f32 accumulation.
    # wf is (c_mid_pad + C_out, C_in) so hall is (c_mid_pad + C_out, L).
    hall = jnp.dot(wf_ref[...], x,
                   preferred_element_type=jnp.float32) + bf_ref[...]

    # conv_1 part -> GroupNorm(1) -> GELU (dropout is identity in eval / p=0)
    h = hall[:c_mid]                                       # (C_mid, L), f32
    h = _groupnorm1(h, g1_ref[...], be1_ref[...])
    h = _gelu_exact(h)

    # conv_2 (mid -> out), MXU operands in the weight dtype, f32 accumulation.
    h = jnp.dot(w2_ref[...], h.astype(w2_ref.dtype),
                preferred_element_type=jnp.float32) + b2_ref[...]

    # group_norm_2 + GELU (is_last=False path)
    h = _groupnorm1(h, g2_ref[...], be2_ref[...])
    h = _gelu_exact(h)

    # Residual (skip projection) sliced late from the fused matmul result;
    # slice starts on an 8-aligned sublane row (c_mid_pad).
    res = hall[c_mid_pad:]                                 # (C_out, L), f32

    o_ref[0] = (h + res).astype(o_ref.dtype)


def res_conv_block(x_ncl, params, *,
                   matmul_dtype=jnp.float32,
                   out_dtype=jnp.float32):
    """x_ncl: (B, C_in, L) float32, PyTorch NCL layout. Returns (B, C_out, L).

    matmul_dtype: dtype of the MXU operands (weights + activations).  Use
    jnp.bfloat16 on v5e/v6e/v7x to hit MXU peak; accumulation and all
    GroupNorm/GELU arithmetic stay in f32.
    """
    B, C_in, L = x_ncl.shape
    C_mid = params["w1"].shape[0]
    C_out = params["w2"].shape[0]

    # Pad the conv_1 block of the fused weight to a sublane multiple so the
    # residual slice starts at an (8,)-aligned row.
    c_mid_pad = ((C_mid + 7) // 8) * 8
    pad = c_mid_pad - C_mid
    F = c_mid_pad + C_out

    f32 = jnp.float32
    # Fused weight: [w1 ; zero-pad ; wskip], torch (out, in) layout.
    w_fused = jnp.concatenate(
        [params["w1"], jnp.zeros((pad, C_in), f32), params["wskip"]],
        axis=0).astype(matmul_dtype)                       # (F, C_in)
    b_fused = jnp.concatenate(
        [params["b1"], jnp.zeros((pad,), f32), params["bskip"]]
    ).astype(f32)[:, None]                                 # (F, 1)
    w2 = params["w2"].astype(matmul_dtype)                 # (C_out, C_mid)
    b2 = params["b2"].astype(f32)[:, None]
    g1 = params["gamma1"].astype(f32)[:, None]
    be1 = params["beta1"].astype(f32)[:, None]
    g2 = params["gamma2"].astype(f32)[:, None]
    be2 = params["beta2"].astype(f32)[:, None]
    x = x_ncl.astype(matmul_dtype)

    # --- explicit VMEM budget ------------------------------------------------
    mm_itemsize = jnp.dtype(matmul_dtype).itemsize
    out_itemsize = jnp.dtype(out_dtype).itemsize
    io_block_bytes = 2 * (C_in * L * mm_itemsize + C_out * L * out_itemsize)
    weight_bytes = 2 * ((F * C_in + C_out * C_mid) * mm_itemsize
                        + (F + 2 * C_mid + 3 * C_out) * 4)
    live_bytes = (F + C_mid + 2 * C_out) * L * 4           # hall, h, h2, out (f32)
    vmem_limit = int(min(max(4 * (io_block_bytes + weight_bytes + live_bytes),
                             16 * 1024 * 1024),
                         64 * 1024 * 1024))

    # --- cost estimate for XLA's scheduler -----------------------------------
    flops = 2 * B * L * (C_in * F + C_mid * C_out)
    transcendentals = B * L * (C_mid + C_out)              # one erf per GELU elem
    bytes_accessed = (B * C_in * L * mm_itemsize
                      + B * C_out * L * out_itemsize
                      + (F * C_in + C_out * C_mid) * mm_itemsize
                      + (F + 2 * C_mid + 3 * C_out) * 4)

    kernel = functools.partial(resconv_kernel, c_mid=C_mid, c_mid_pad=c_mid_pad)
    full = lambda shape: pl.BlockSpec(shape, lambda b: (0,) * len(shape))

    out = pl.pallas_call(
        kernel,
        out_shape=jax.ShapeDtypeStruct((B, C_out, L), out_dtype),
        grid_spec=pltpu.PrefetchScalarGridSpec(
            num_scalar_prefetch=0,
            grid=(B,),
            in_specs=[
                pl.BlockSpec((1, C_in, L), lambda b: (b, 0, 0)),
                full((F, C_in)),       # fused weight
                full((F, 1)),          # fused bias
                full((C_mid, 1)),      # gamma1
                full((C_mid, 1)),      # beta1
                full((C_out, C_mid)),  # w2
                full((C_out, 1)),      # b2
                full((C_out, 1)),      # gamma2
                full((C_out, 1)),      # beta2
            ],
            out_specs=pl.BlockSpec((1, C_out, L), lambda b: (b, 0, 0)),
        ),
        compiler_params=pltpu.CompilerParams(
            dimension_semantics=("parallel",),
            vmem_limit_bytes=vmem_limit),
        cost_estimate=pl.CostEstimate(flops=flops,
                                      transcendentals=transcendentals,
                                      bytes_accessed=bytes_accessed),
    )(x, w_fused, b_fused, g1, be1, w2, b2, g2, be2)

    return out


def _xavier_uniform(key, fan_in, fan_out):
    bound = (6.0 / (fan_in + fan_out)) ** 0.5
    # torch nn.Linear layout: (out_features, in_features)
    return jax.random.uniform(key, (fan_out, fan_in), jnp.float32, -bound, bound)


def make_params(key, c_in, c_mid, c_out):
    k_skip, k1, k2 = jax.random.split(key, 3)
    return {
        # conv_skip: nn.Linear(in, out); deterministic xavier init, zero bias
        "wskip": _xavier_uniform(k_skip, c_in, c_out),
        "bskip": jnp.zeros((c_out,), jnp.float32),
        # conv_1: xavier_uniform weight, zero bias (init_layer)
        "w1": _xavier_uniform(k1, c_in, c_mid),
        "b1": jnp.zeros((c_mid,), jnp.float32),
        # group_norm_1: default affine init
        "gamma1": jnp.ones((c_mid,), jnp.float32),
        "beta1": jnp.zeros((c_mid,), jnp.float32),
        # conv_2: xavier_uniform weight, zero bias (init_layer)
        "w2": _xavier_uniform(k2, c_mid, c_out),
        "b2": jnp.zeros((c_out,), jnp.float32),
        # group_norm_2: default affine init
        "gamma2": jnp.ones((c_out,), jnp.float32),
        "beta2": jnp.zeros((c_out,), jnp.float32),
    }


def reference(x_ncl, p):
    """Pure-JAX f32 reference mirroring the PyTorch forward (eval mode)."""
    def lin(w, b, h):          # w: (out, in), h: (B, in, L)
        return jnp.einsum("oi,bil->bol", w, h) + b[None, :, None]

    def gn(h, gamma, beta):
        mean = jnp.mean(h, axis=(1, 2), keepdims=True)
        var = jnp.mean((h - mean) ** 2, axis=(1, 2), keepdims=True)
        return ((h - mean) / jnp.sqrt(var + _EPS)
                * gamma[None, :, None] + beta[None, :, None])

    res = lin(p["wskip"], p["bskip"], x_ncl)
    h = lin(p["w1"], p["b1"], x_ncl)
    h = gn(h, p["gamma1"], p["beta1"])
    h = _gelu_exact(h)
    h = lin(p["w2"], p["b2"], h)
    h = gn(h, p["gamma2"], p["beta2"])
    h = _gelu_exact(h)
    return h + res


if __name__ == "__main__":
    B, C_IN, C_MID, C_OUT, L = 2, 4, 8, 6, 128

    key = jax.random.PRNGKey(0)
    k_x, k_p = jax.random.split(key)
    x = jax.random.normal(k_x, (B, C_IN, L), jnp.float32)   # PyTorch NCL layout
    params = make_params(k_p, C_IN, C_MID, C_OUT)

    ref = jax.block_until_ready(reference(x, params))

    # f32 MXU operands: should match the reference tightly.
    out_f32 = jax.block_until_ready(
        res_conv_block(x, params, matmul_dtype=jnp.float32))
    assert out_f32.shape == (B, C_OUT, L)
    assert jnp.allclose(out_f32, ref, atol=1e-4, rtol=1e-4), (
        f"f32 path max abs err {jnp.max(jnp.abs(out_f32 - ref))}")

    # bf16 MXU operands (v5e/v6e/v7x MXU peak path), f32 accumulation / norm:
    # loose tolerance against the f32 reference.
    out_bf16 = jax.block_until_ready(
        res_conv_block(x, params, matmul_dtype=jnp.bfloat16))
    assert out_bf16.shape == (B, C_OUT, L)
    assert jnp.allclose(out_bf16, ref, atol=1e-1, rtol=1e-1), (
        f"bf16 path max abs err {jnp.max(jnp.abs(out_bf16 - ref))}")

    print("KERNEL_OK")
</pallas_src>

<mosaic_0001>
module attributes {stable_mosaic.version = 11 : i64} {
  func.func @resconv_kernel(%arg0: i32, %arg1: memref<1x4x128xf32, #tpu.memory_space<vmem>>, %arg2: memref<14x4xf32, #tpu.memory_space<vmem>>, %arg3: memref<14x1xf32, #tpu.memory_space<vmem>>, %arg4: memref<8x1xf32, #tpu.memory_space<vmem>>, %arg5: memref<8x1xf32, #tpu.memory_space<vmem>>, %arg6: memref<6x8xf32, #tpu.memory_space<vmem>>, %arg7: memref<6x1xf32, #tpu.memory_space<vmem>>, %arg8: memref<6x1xf32, #tpu.memory_space<vmem>>, %arg9: memref<6x1xf32, #tpu.memory_space<vmem>>, %arg10: memref<1x6x128xf32, #tpu.memory_space<vmem>>) attributes {dimension_semantics = [#tpu.dimension_semantics<parallel>], iteration_bounds = array<i64: 2>, scalar_prefetch = 0 : i64, scratch_operands = 0 : i64, tpu.core_type = #tpu.core_type<tc>, window_params = [{transform_indices = @transform_0, window_bounds = array<i64: 1, 4, 128>}, {pipeline_mode = #tpu.pipeline_mode<synchronous>, transform_indices = @transform_1, window_bounds = array<i64: 14, 4>}, {pipeline_mode = #tpu.pipeline_mode<synchronous>, transform_indices = @transform_2, window_bounds = array<i64: 14, 1>}, {pipeline_mode = #tpu.pipeline_mode<synchronous>, transform_indices = @transform_3, window_bounds = array<i64: 8, 1>}, {pipeline_mode = #tpu.pipeline_mode<synchronous>, transform_indices = @transform_4, window_bounds = array<i64: 8, 1>}, {pipeline_mode = #tpu.pipeline_mode<synchronous>, transform_indices = @transform_5, window_bounds = array<i64: 6, 8>}, {pipeline_mode = #tpu.pipeline_mode<synchronous>, transform_indices = @transform_6, window_bounds = array<i64: 6, 1>}, {pipeline_mode = #tpu.pipeline_mode<synchronous>, transform_indices = @transform_7, window_bounds = array<i64: 6, 1>}, {pipeline_mode = #tpu.pipeline_mode<synchronous>, transform_indices = @transform_8, window_bounds = array<i64: 6, 1>}, {transform_indices = @transform_9, window_bounds = array<i64: 1, 6, 128>}]} {
    %c0 = arith.constant 0 : index
    %c0_0 = arith.constant 0 : index
    %c0_1 = arith.constant 0 : index
    %0 = vector.load %arg1[%c0, %c0_0, %c0_1] : memref<1x4x128xf32, #tpu.memory_space<vmem>>, vector<1x4x128xf32>
    %1 = vector.shape_cast %0 : vector<1x4x128xf32> to vector<4x128xf32>
    %c0_2 = arith.constant 0 : index
    %c0_3 = arith.constant 0 : index
    %2 = vector.load %arg2[%c0_2, %c0_3] : memref<14x4xf32, #tpu.memory_space<vmem>>, vector<14x4xf32>
    %cst = arith.constant dense<0.000000e+00> : vector<14x128xf32>
    %3 = tpu.matmul %2, %1, %cst {dimension_numbers = #tpu.dot_dimension_numbers<[1], [0], [0], [1], [0, 0, 1, 1], [], []>} : vector<14x4xf32>, vector<4x128xf32>, vector<14x128xf32> -> vector<14x128xf32>
    %c0_4 = arith.constant 0 : index
    %c0_5 = arith.constant 0 : index
    %4 = vector.load %arg3[%c0_4, %c0_5] : memref<14x1xf32, #tpu.memory_space<vmem>>, vector<14x1xf32>
    %5 = vector.broadcast %4 : vector<14x1xf32> to vector<14x128xf32>
    %6 = arith.addf %3, %5 : vector<14x128xf32>
    %7 = vector.extract_strided_slice %6 {offsets = [0, 0], sizes = [8, 128], strides = [1, 1]} : vector<14x128xf32> to vector<8x128xf32>
    %c0_6 = arith.constant 0 : index
    %c0_7 = arith.constant 0 : index
    %8 = vector.load %arg4[%c0_6, %c0_7] : memref<8x1xf32, #tpu.memory_space<vmem>>, vector<8x1xf32>
    %c0_8 = arith.constant 0 : index
    %c0_9 = arith.constant 0 : index
    %9 = vector.load %arg5[%c0_8, %c0_9] : memref<8x1xf32, #tpu.memory_space<vmem>>, vector<8x1xf32>
    %10 = vector.shape_cast %7 : vector<8x128xf32> to vector<1x8x128xf32>
    %cst_10 = arith.constant dense<0.000000e+00> : vector<1xf32>
    %11 = vector.multi_reduction <add>, %10, %cst_10 [1, 2] : vector<1x8x128xf32> to vector<1xf32>
    %12 = vector.shape_cast %11 : vector<1xf32> to vector<1x1x1xf32>
    %13 = vector.extract %12[0, 0, 0] : f32 from vector<1x1x1xf32>
    %14 = arith.mulf %7, %7 : vector<8x128xf32>
    %15 = vector.shape_cast %14 : vector<8x128xf32> to vector<1x8x128xf32>
    %cst_11 = arith.constant dense<0.000000e+00> : vector<1xf32>
    %16 = vector.multi_reduction <add>, %15, %cst_11 [1, 2] : vector<1x8x128xf32> to vector<1xf32>
    %17 = vector.shape_cast %16 : vector<1xf32> to vector<1x1x1xf32>
    %18 = vector.extract %17[0, 0, 0] : f32 from vector<1x1x1xf32>
    %cst_12 = arith.constant 9.765625E-4 : f32
    %19 = arith.mulf %13, %cst_12 : f32
    %cst_13 = arith.constant 9.765625E-4 : f32
    %20 = arith.mulf %18, %cst_13 : f32
    %21 = arith.mulf %19, %19 : f32
    %22 = arith.subf %20, %21 : f32
    %cst_14 = arith.constant 0.000000e+00 : f32
    %23 = arith.maximumf %22, %cst_14 : f32
    %cst_15 = arith.constant 9.99999974E-6 : f32
    %24 = arith.addf %23, %cst_15 : f32
    %25 = math.rsqrt %24 : f32
    %26 = vector.broadcast %19 : f32 to vector<8x128xf32>
    %27 = arith.subf %7, %26 : vector<8x128xf32>
    %28 = vector.broadcast %25 : f32 to vector<8x128xf32>
    %29 = arith.mulf %27, %28 : vector<8x128xf32>
    %30 = vector.broadcast %8 : vector<8x1xf32> to vector<8x128xf32>
    %31 = arith.mulf %29, %30 : vector<8x128xf32>
    %32 = vector.broadcast %9 : vector<8x1xf32> to vector<8x128xf32>
    %33 = arith.addf %31, %32 : vector<8x128xf32>
    %cst_16 = arith.constant 5.000000e-01 : f32
    %34 = vector.broadcast %cst_16 : f32 to vector<8x128xf32>
    %35 = arith.mulf %34, %33 : vector<8x128xf32>
    %cst_17 = arith.constant 0.707106769 : f32
    %36 = vector.broadcast %cst_17 : f32 to vector<8x128xf32>
    %37 = arith.mulf %33, %36 : vector<8x128xf32>
    %38 = math.erf %37 : vector<8x128xf32>
    %cst_18 = arith.constant 1.000000e+00 : f32
    %39 = vector.broadcast %cst_18 : f32 to vector<8x128xf32>
    %40 = arith.addf %39, %38 : vector<8x128xf32>
    %41 = arith.mulf %35, %40 : vector<8x128xf32>
    %c0_19 = arith.constant 0 : index
    %c0_20 = arith.constant 0 : index
    %42 = vector.load %arg6[%c0_19, %c0_20] : memref<6x8xf32, #tpu.memory_space<vmem>>, vector<6x8xf32>
    %cst_21 = arith.constant dense<0.000000e+00> : vector<6x128xf32>
    %43 = tpu.matmul %42, %41, %cst_21 {dimension_numbers = #tpu.dot_dimension_numbers<[1], [0], [0], [1], [0, 0, 1, 1], [], []>} : vector<6x8xf32>, vector<8x128xf32>, vector<6x128xf32> -> vector<6x128xf32>
    %c0_22 = arith.constant 0 : index
    %c0_23 = arith.constant 0 : index
    %44 = vector.load %arg7[%c0_22, %c0_23] : memref<6x1xf32, #tpu.memory_space<vmem>>, vector<6x1xf32>
    %45 = vector.broadcast %44 : vector<6x1xf32> to vector<6x128xf32>
    %46 = arith.addf %43, %45 : vector<6x128xf32>
    %c0_24 = arith.constant 0 : index
    %c0_25 = arith.constant 0 : index
    %47 = vector.load %arg8[%c0_24, %c0_25] : memref<6x1xf32, #tpu.memory_space<vmem>>, vector<6x1xf32>
    %c0_26 = arith.constant 0 : index
    %c0_27 = arith.constant 0 : index
    %48 = vector.load %arg9[%c0_26, %c0_27] : memref<6x1xf32, #tpu.memory_space<vmem>>, vector<6x1xf32>
    %49 = vector.shape_cast %46 : vector<6x128xf32> to vector<1x6x128xf32>
    %cst_28 = arith.constant dense<0.000000e+00> : vector<1xf32>
    %50 = vector.multi_reduction <add>, %49, %cst_28 [1, 2] : vector<1x6x128xf32> to vector<1xf32>
    %51 = vector.shape_cast %50 : vector<1xf32> to vector<1x1x1xf32>
    %52 = vector.extract %51[0, 0, 0] : f32 from vector<1x1x1xf32>
    %53 = arith.mulf %46, %46 : vector<6x128xf32>
    %54 = vector.shape_cast %53 : vector<6x128xf32> to vector<1x6x128xf32>
    %cst_29 = arith.constant dense<0.000000e+00> : vector<1xf32>
    %55 = vector.multi_reduction <add>, %54, %cst_29 [1, 2] : vector<1x6x128xf32> to vector<1xf32>
    %56 = vector.shape_cast %55 : vector<1xf32> to vector<1x1x1xf32>
    %57 = vector.extract %56[0, 0, 0] : f32 from vector<1x1x1xf32>
    %cst_30 = arith.constant 0.00130208337 : f32
    %58 = arith.mulf %52, %cst_30 : f32
    %cst_31 = arith.constant 0.00130208337 : f32
    %59 = arith.mulf %57, %cst_31 : f32
    %60 = arith.mulf %58, %58 : f32
    %61 = arith.subf %59, %60 : f32
    %cst_32 = arith.constant 0.000000e+00 : f32
    %62 = arith.maximumf %61, %cst_32 : f32
    %cst_33 = arith.constant 9.99999974E-6 : f32
    %63 = arith.addf %62, %cst_33 : f32
    %64 = math.rsqrt %63 : f32
    %65 = vector.broadcast %58 : f32 to vector<6x128xf32>
    %66 = arith.subf %46, %65 : vector<6x128xf32>
    %67 = vector.broadcast %64 : f32 to vector<6x128xf32>
    %68 = arith.mulf %66, %67 : vector<6x128xf32>
    %69 = vector.broadcast %47 : vector<6x1xf32> to vector<6x128xf32>
    %70 = arith.mulf %68, %69 : vector<6x128xf32>
    %71 = vector.broadcast %48 : vector<6x1xf32> to vector<6x128xf32>
    %72 = arith.addf %70, %71 : vector<6x128xf32>
    %cst_34 = arith.constant 5.000000e-01 : f32
    %73 = vector.broadcast %cst_34 : f32 to vector<6x128xf32>
    %74 = arith.mulf %73, %72 : vector<6x128xf32>
    %cst_35 = arith.constant 0.707106769 : f32
    %75 = vector.broadcast %cst_35 : f32 to vector<6x128xf32>
    %76 = arith.mulf %72, %75 : vector<6x128xf32>
    %77 = math.erf %76 : vector<6x128xf32>
    %cst_36 = arith.constant 1.000000e+00 : f32
    %78 = vector.broadcast %cst_36 : f32 to vector<6x128xf32>
    %79 = arith.addf %78, %77 : vector<6x128xf32>
    %80 = arith.mulf %74, %79 : vector<6x128xf32>
    %81 = vector.extract_strided_slice %6 {offsets = [8, 0], sizes = [6, 128], strides = [1, 1]} : vector<14x128xf32> to vector<6x128xf32>
    %82 = arith.addf %80, %81 : vector<6x128xf32>
    %c0_37 = arith.constant 0 : index
    %c0_38 = arith.constant 0 : index
    %c0_39 = arith.constant 0 : index
    %83 = vector.load %arg10[%c0_37, %c0_38, %c0_39] : memref<1x6x128xf32, #tpu.memory_space<vmem>>, vector<1x6x128xf32>
    %84 = vector.shape_cast %83 : vector<1x6x128xf32> to vector<6x128xf32>
    %85 = vector.shape_cast %82 : vector<6x128xf32> to vector<1x6x128xf32>
    tpu.vector_store %arg10[%c0_37, %c0_38, %c0_39], %85 {strides = array<i32>} : memref<1x6x128xf32, #tpu.memory_space<vmem>>, vector<1x6x128xf32>,
    return
  }
  func.func @transform_0(%arg0: i32) -> (i32, i32, i32) {
    %c0_i32 = arith.constant 0 : i32
    %c0_i32_0 = arith.constant 0 : i32
    %c0_i32_1 = arith.constant 0 : i32
    return %arg0, %c0_i32, %c0_i32_0 : i32, i32, i32
  }
  func.func @transform_1(%arg0: i32) -> (i32, i32) {
    %c0_i32 = arith.constant 0 : i32
    %c0_i32_0 = arith.constant 0 : i32
    %c0_i32_1 = arith.constant 0 : i32
    return %c0_i32, %c0_i32_0 : i32, i32
  }
  func.func @transform_2(%arg0: i32) -> (i32, i32) {
    %c0_i32 = arith.constant 0 : i32
    %c0_i32_0 = arith.constant 0 : i32
    %c0_i32_1 = arith.constant 0 : i32
    return %c0_i32, %c0_i32_0 : i32, i32
  }
  func.func @transform_3(%arg0: i32) -> (i32, i32) {
    %c0_i32 = arith.constant 0 : i32
    %c0_i32_0 = arith.constant 0 : i32
    %c0_i32_1 = arith.constant 0 : i32
    return %c0_i32, %c0_i32_0 : i32, i32
  }
  func.func @transform_4(%arg0: i32) -> (i32, i32) {
    %c0_i32 = arith.constant 0 : i32
    %c0_i32_0 = arith.constant 0 : i32
    %c0_i32_1 = arith.constant 0 : i32
    return %c0_i32, %c0_i32_0 : i32, i32
  }
  func.func @transform_5(%arg0: i32) -> (i32, i32) {
    %c0_i32 = arith.constant 0 : i32
    %c0_i32_0 = arith.constant 0 : i32
    %c0_i32_1 = arith.constant 0 : i32
    return %c0_i32, %c0_i32_0 : i32, i32
  }
  func.func @transform_6(%arg0: i32) -> (i32, i32) {
    %c0_i32 = arith.constant 0 : i32
    %c0_i32_0 = arith.constant 0 : i32
    %c0_i32_1 = arith.constant 0 : i32
    return %c0_i32, %c0_i32_0 : i32, i32
  }
  func.func @transform_7(%arg0: i32) -> (i32, i32) {
    %c0_i32 = arith.constant 0 : i32
    %c0_i32_0 = arith.constant 0 : i32
    %c0_i32_1 = arith.constant 0 : i32
    return %c0_i32, %c0_i32_0 : i32, i32
  }
  func.func @transform_8(%arg0: i32) -> (i32, i32) {
    %c0_i32 = arith.constant 0 : i32
    %c0_i32_0 = arith.constant 0 : i32
    %c0_i32_1 = arith.constant 0 : i32
    return %c0_i32, %c0_i32_0 : i32, i32
  }
  func.func @transform_9(%arg0: i32) -> (i32, i32, i32) {
    %c0_i32 = arith.constant 0 : i32
    %c0_i32_0 = arith.constant 0 : i32
    %c0_i32_1 = arith.constant 0 : i32
    return %arg0, %c0_i32, %c0_i32_0 : i32, i32, i32
  }
}

</mosaic_0001>

<llo_original>
// kernel: tpu_custom_call.1
$region0: #{tpu_custom_call.1}
  #allocation0 [shape = 'u32[]', space=smem, size = 0x4, offset = 0x4, fixed_abs, tag = 'smem constant byte address 0x4 - core index']
  #allocation1 [shape = 'u32[144,128]{1,0:T(1,128)}', space=vmem, size = 0x12000, scoped, tag = 'internal scratch']
  %s0 = inlined_call_operand.vmem [shape: f32[2,4,128], index: 0, kind: input, shape index: {}]
  %s1 = inlined_call_operand.vmem [shape: f32[14,4], index: 1, kind: input, shape index: {}]
  %s2 = inlined_call_operand.vmem [shape: f32[14,1], index: 2, kind: input, shape index: {}]
  %s3 = inlined_call_operand.vmem [shape: f32[8,1], index: 3, kind: input, shape index: {}]
  %s4 = inlined_call_operand.vmem [shape: f32[8,1], index: 4, kind: input, shape index: {}]
  %s5 = inlined_call_operand.vmem [shape: f32[6,8], index: 5, kind: input, shape index: {}]
  %s6 = inlined_call_operand.vmem [shape: f32[6,1], index: 6, kind: input, shape index: {}]
  %s7 = inlined_call_operand.vmem [shape: f32[6,1], index: 7, kind: input, shape index: {}]
  %s8 = inlined_call_operand.vmem [shape: f32[6,1], index: 8, kind: input, shape index: {}]
  %s9 = inlined_call_operand.vmem [shape: f32[2,6,128], index: 9, kind: output, shape index: {}]
  %s10 = sld [smem:[#allocation0]]
  $region69: #{tpu_custom_call.1} parent=0
    _
  %s12 = ssub.s32 1, %s10
  %s13 = scalar_select 0, %s12, %s10
  loop: start=0, step=1, limit=4
  $region2: #{tpu_custom_call.1} parent=0 // loop_pre_header
    _
  $region3: #{tpu_custom_call.1} parent=0 // loop_header
    %s15 = sphi 0, %s19
    %p16 = scmp.ge.s32.totalorder %s15, 4
    %s25 = sphi 0, %s27
    %s28 = sphi 0, %s25
    %s29 = sphi 0, %s28
    %s45 = sphi 0, %s29
    %s49 = sphi 0, %s49
    %s51 = sphi 0, %s49
    %s52 = sphi 0, %s51
    %s66 = sphi 0, %s52
    %s70 = sphi 0, %s70
    %s72 = sphi 0, %s70
    %s73 = sphi 0, %s72
    %s87 = sphi 0, %s73
    %s91 = sphi 0, %s91
    %s93 = sphi 0, %s91
    %s94 = sphi 0, %s93
    %s108 = sphi 0, %s94
    %s112 = sphi 0, %s112
    %s114 = sphi 0, %s112
    %s115 = sphi 0, %s114
    %s129 = sphi 0, %s115
    %s133 = sphi 0, %s133
    %s135 = sphi 0, %s133
    %s136 = sphi 0, %s135
    %s150 = sphi 0, %s136
    %s154 = sphi 0, %s154
    %s156 = sphi 0, %s154
    %s157 = sphi 0, %s156
    %s171 = sphi 0, %s157
    %s175 = sphi 0, %s175
    %s177 = sphi 0, %s175
    %s178 = sphi 0, %s177
    %s192 = sphi 0, %s178
    %s196 = sphi 0, %s196
    %s198 = sphi 0, %s196
    %s199 = sphi 0, %s198
    %s213 = sphi 0, %s199
    %s219 = sphi 0, %s221
    %s222 = sphi 0, %s219
    %s223 = sphi 0, %s222
    %s239 = sphi 0, %s223
  $region4: #{tpu_custom_call.1} parent=0 // loop_header_branch
    %18 = sbr.rel (%p16) target = $region8
  $region5: #{tpu_custom_call.1} parent=0 // loop_body
    %s20 = ssub.s32 %s15, 1
    %s21 = ssub.s32 %s15, 2
    %s22 = sadd.s32 %s15, 1
    %s23 = ssub.s32 %s15, %s22
    %p24 = scmp.eq.s32.totalorder %s23, 0
    %s26 = sadd.s32 %s25, 1
    %s27 = scalar_select %p24, %s25, %s26
    %p30 = pneg %p24
    %p31 = scmp.eq.s32.totalorder %s15, 1
    %p32 = por %p30, %p31
    %p33 = scmp.ne.s32.totalorder %s25, %s28
    %p34 = scmp.eq.s32.totalorder %s15, 0
    %p35 = por %p33, %p34
    %p36 = scmp.ne.s32.totalorder %s25, %s28
    %p37 = scmp.eq.s32.totalorder %s20, 1
    %p38 = por %p36, %p37
    %p39 = scmp.ne.s32.totalorder %s28, %s29
    %p40 = scmp.eq.s32.totalorder %s20, 0
    %p41 = por %p39, %p40
    %p42 = scmp.ne.s32.totalorder %s28, %s29
    %p43 = scmp.eq.s32.totalorder %s21, 1
    %p44 = por %p42, %p43
    %p46 = scmp.ne.s32.totalorder %s29, %s45
    %p47 = scmp.eq.s32.totalorder %s21, 0
    %p48 = por %p46, %p47
    %s50 = sadd.s32 %s49, 1
    %p53 = scmp.eq.s32.totalorder %s15, 1
    %p54 = scmp.ne.s32.totalorder %s49, %s51
    %p55 = scmp.eq.s32.totalorder %s15, 0
    %p56 = por %p54, %p55
    %p57 = scmp.ne.s32.totalorder %s49, %s51
    %p58 = scmp.eq.s32.totalorder %s20, 1
    %p59 = por %p57, %p58
    %p60 = scmp.ne.s32.totalorder %s51, %s52
    %p61 = scmp.eq.s32.totalorder %s20, 0
    %p62 = por %p60, %p61
    %p63 = scmp.ne.s32.totalorder %s51, %s52
    %p64 = scmp.eq.s32.totalorder %s21, 1
    %p65 = por %p63, %p64
    %p67 = scmp.ne.s32.totalorder %s52, %s66
    %p68 = scmp.eq.s32.totalorder %s21, 0
    %p69 = por %p67, %p68
    %s71 = sadd.s32 %s70, 1
    %p74 = scmp.eq.s32.totalorder %s15, 1
    %p75 = scmp.ne.s32.totalorder %s70, %s72
    %p76 = scmp.eq.s32.totalorder %s15, 0
    %p77 = por %p75, %p76
    %p78 = scmp.ne.s32.totalorder %s70, %s72
    %p79 = scmp.eq.s32.totalorder %s20, 1
    %p80 = por %p78, %p79
    %p81 = scmp.ne.s32.totalorder %s72, %s73
    %p82 = scmp.eq.s32.totalorder %s20, 0
    %p83 = por %p81, %p82
    %p84 = scmp.ne.s32.totalorder %s72, %s73
    %p85 = scmp.eq.s32.totalorder %s21, 1
    %p86 = por %p84, %p85
    %p88 = scmp.ne.s32.totalorder %s73, %s87
    %p89 = scmp.eq.s32.totalorder %s21, 0
    %p90 = por %p88, %p89
    %s92 = sadd.s32 %s91, 1
    %p95 = scmp.eq.s32.totalorder %s15, 1
    %p96 = scmp.ne.s32.totalorder %s91, %s93
    %p97 = scmp.eq.s32.totalorder %s15, 0
    %p98 = por %p96, %p97
    %p99 = scmp.ne.s32.totalorder %s91, %s93
    %p100 = scmp.eq.s32.totalorder %s20, 1
    %p101 = por %p99, %p100
    %p102 = scmp.ne.s32.totalorder %s93, %s94
    %p103 = scmp.eq.s32.totalorder %s20, 0
    %p104 = por %p102, %p103
    %p105 = scmp.ne.s32.totalorder %s93, %s94
    %p106 = scmp.eq.s32.totalorder %s21, 1
    %p107 = por %p105, %p106
    %p109 = scmp.ne.s32.totalorder %s94, %s108
    %p110 = scmp.eq.s32.totalorder %s21, 0
    %p111 = por %p109, %p110
    %s113 = sadd.s32 %s112, 1
    %p116 = scmp.eq.s32.totalorder %s15, 1
    %p117 = scmp.ne.s32.totalorder %s112, %s114
    %p118 = scmp.eq.s32.totalorder %s15, 0
    %p119 = por %p117, %p118
    %p120 = scmp.ne.s32.totalorder %s112, %s114
    %p121 = scmp.eq.s32.totalorder %s20, 1
    %p122 = por %p120, %p121
    %p123 = scmp.ne.s32.totalorder %s114, %s115
    %p124 = scmp.eq.s32.totalorder %s20, 0
    %p125 = por %p123, %p124
    %p126 = scmp.ne.s32.totalorder %s114, %s115
    %p127 = scmp.eq.s32.totalorder %s21, 1
    %p128 = por %p126, %p127
    %p130 = scmp.ne.s32.totalorder %s115, %s129
    %p131 = scmp.eq.s32.totalorder %s21, 0
    %p132 = por %p130, %p131
    %s134 = sadd.s32 %s133, 1
    %p137 = scmp.eq.s32.totalorder %s15, 1
    %p138 = scmp.ne.s32.totalorder %s133, %s135
    %p139 = scmp.eq.s32.totalorder %s15, 0
    %p140 = por %p138, %p139
    %p141 = scmp.ne.s32.totalorder %s133, %s135
    %p142 = scmp.eq.s32.totalorder %s20, 1
    %p143 = por %p141, %p142
    %p144 = scmp.ne.s32.totalorder %s135, %s136
    %p145 = scmp.eq.s32.totalorder %s20, 0
    %p146 = por %p144, %p145
    %p147 = scmp.ne.s32.totalorder %s135, %s136
    %p148 = scmp.eq.s32.totalorder %s21, 1
    %p149 = por %p147, %p148
    %p151 = scmp.ne.s32.totalorder %s136, %s150
    %p152 = scmp.eq.s32.totalorder %s21, 0
    %p153 = por %p151, %p152
    %s155 = sadd.s32 %s154, 1
    %p158 = scmp.eq.s32.totalorder %s15, 1
    %p159 = scmp.ne.s32.totalorder %s154, %s156
    %p160 = scmp.eq.s32.totalorder %s15, 0
    %p161 = por %p159, %p160
    %p162 = scmp.ne.s32.totalorder %s154, %s156
    %p163 = scmp.eq.s32.totalorder %s20, 1
    %p164 = por %p162, %p163
    %p165 = scmp.ne.s32.totalorder %s156, %s157
    %p166 = scmp.eq.s32.totalorder %s20, 0
    %p167 = por %p165, %p166
    %p168 = scmp.ne.s32.totalorder %s156, %s157
    %p169 = scmp.eq.s32.totalorder %s21, 1
    %p170 = por %p168, %p169
    %p172 = scmp.ne.s32.totalorder %s157, %s171
    %p173 = scmp.eq.s32.totalorder %s21, 0
    %p174 = por %p172, %p173
    %s176 = sadd.s32 %s175, 1
    %p179 = scmp.eq.s32.totalorder %s15, 1
    %p180 = scmp.ne.s32.totalorder %s175, %s177
    %p181 = scmp.eq.s32.totalorder %s15, 0
    %p182 = por %p180, %p181
    %p183 = scmp.ne.s32.totalorder %s175, %s177
    %p184 = scmp.eq.s32.totalorder %s20, 1
    %p185 = por %p183, %p184
    %p186 = scmp.ne.s32.totalorder %s177, %s178
    %p187 = scmp.eq.s32.totalorder %s20, 0
    %p188 = por %p186, %p187
    %p189 = scmp.ne.s32.totalorder %s177, %s178
    %p190 = scmp.eq.s32.totalorder %s21, 1
    %p191 = por %p189, %p190
    %p193 = scmp.ne.s32.totalorder %s178, %s192
    %p194 = scmp.eq.s32.totalorder %s21, 0
    %p195 = por %p193, %p194
    %s197 = sadd.s32 %s196, 1
    %p200 = scmp.eq.s32.totalorder %s15, 1
    %p201 = scmp.ne.s32.totalorder %s196, %s198
    %p202 = scmp.eq.s32.totalorder %s15, 0
    %p203 = por %p201, %p202
    %p204 = scmp.ne.s32.totalorder %s196, %s198
    %p205 = scmp.eq.s32.totalorder %s20, 1
    %p206 = por %p204, %p205
    %p207 = scmp.ne.s32.totalorder %s198, %s199
    %p208 = scmp.eq.s32.totalorder %s20, 0
    %p209 = por %p207, %p208
    %p210 = scmp.ne.s32.totalorder %s198, %s199
    %p211 = scmp.eq.s32.totalorder %s21, 1
    %p212 = por %p210, %p211
    %p214 = scmp.ne.s32.totalorder %s199, %s213
    %p215 = scmp.eq.s32.totalorder %s21, 0
    %p216 = por %p214, %p215
    %s217 = ssub.s32 %s15, %s22
    %p218 = scmp.eq.s32.totalorder %s217, 0
    %s220 = sadd.s32 %s219, 1
    %s221 = scalar_select %p218, %s219, %s220
    %p224 = pneg %p218
    %p225 = scmp.eq.s32.totalorder %s15, 1
    %p226 = por %p224, %p225
    %p227 = scmp.ne.s32.totalorder %s219, %s222
    %p228 = scmp.eq.s32.totalorder %s15, 0
    %p229 = por %p227, %p228
    %p230 = scmp.ne.s32.totalorder %s219, %s222
    %p231 = scmp.eq.s32.totalorder %s20, 1
    %p232 = por %p230, %p231
    %p233 = scmp.ne.s32.totalorder %s222, %s223
    %p234 = scmp.eq.s32.totalorder %s20, 0
    %p235 = por %p233, %p234
    %p236 = scmp.ne.s32.totalorder %s222, %s223
    %p237 = scmp.eq.s32.totalorder %s21, 1
    %p238 = por %p236, %p237
    %p240 = scmp.ne.s32.totalorder %s223, %s239
    %p241 = scmp.eq.s32.totalorder %s21, 0
    %p242 = por %p240, %p241
    %p243 = scmp.le.s32.totalorder 1, %s15
    %p244 = scmp.lt.s32.totalorder %s15, 3
    %p245 = pnand %p243, %p244
    %p246 = pneg %p245
    // Predicated region
    $region9: #{tpu_custom_call.1} parent=5 // pred_check
      _
    $region10: #{tpu_custom_call.1} parent=5 // pred_check_branch
      %248 = sbr.rel (%p245) target = $region12
    $region11: #{tpu_custom_call.1} parent=5 // pred_region
      %s249 = ssub.s32 %s15, 1
      // Predicated region
      $region13: #{tpu_custom_call.1} parent=11 // pred_check
        %p250 = pneg %p62
      $region14: #{tpu_custom_call.1} parent=11 // pred_check_branch
        %252 = sbr.rel (%p250) target = $region16
      $region15: #{tpu_custom_call.1} parent=11 // pred_region
        _
      $region16: #{tpu_custom_call.1} parent=11 // pred_fallthru
        _
      // Predicated region
      $region17: #{tpu_custom_call.1} parent=11 // pred_check
        %p253 = pneg %p83
      $region18: #{tpu_custom_call.1} parent=11 // pred_check_branch
        %255 = sbr.rel (%p253) target = $region20
      $region19: #{tpu_custom_call.1} parent=11 // pred_region
        _
      $region20: #{tpu_custom_call.1} parent=11 // pred_fallthru
        _
      // Predicated region
      $region21: #{tpu_custom_call.1} parent=11 // pred_check
        %p256 = pneg %p104
      $region22: #{tpu_custom_call.1} parent=11 // pred_check_branch
        %258 = sbr.rel (%p256) target = $region24
      $region23: #{tpu_custom_call.1} parent=11 // pred_region
        _
      $region24: #{tpu_custom_call.1} parent=11 // pred_fallthru
        _
      // Predicated region
      $region25: #{tpu_custom_call.1} parent=11 // pred_check
        %p259 = pneg %p125
      $region26: #{tpu_custom_call.1} parent=11 // pred_check_branch
        %261 = sbr.rel (%p259) target = $region28
      $region27: #{tpu_custom_call.1} parent=11 // pred_region
        _
      $region28: #{tpu_custom_call.1} parent=11 // pred_fallthru
        _
      // Predicated region
      $region29: #{tpu_custom_call.1} parent=11 // pred_check
        %p262 = pneg %p146
      $region30: #{tpu_custom_call.1} parent=11 // pred_check_branch
        %264 = sbr.rel (%p262) target = $region32
      $region31: #{tpu_custom_call.1} parent=11 // pred_region
        _
      $region32: #{tpu_custom_call.1} parent=11 // pred_fallthru
        _
      // Predicated region
      $region33: #{tpu_custom_call.1} parent=11 // pred_check
        %p265 = pneg %p167
      $region34: #{tpu_custom_call.1} parent=11 // pred_check_branch
        %267 = sbr.rel (%p265) target = $region36
      $region35: #{tpu_custom_call.1} parent=11 // pred_region
        _
      $region36: #{tpu_custom_call.1} parent=11 // pred_fallthru
        _
      // Predicated region
      $region37: #{tpu_custom_call.1} parent=11 // pred_check
        %p268 = pneg %p188
      $region38: #{tpu_custom_call.1} parent=11 // pred_check_branch
        %270 = sbr.rel (%p268) target = $region40
      $region39: #{tpu_custom_call.1} parent=11 // pred_region
        _
      $region40: #{tpu_custom_call.1} parent=11 // pred_fallthru
        _
      // Predicated region
      $region41: #{tpu_custom_call.1} parent=11 // pred_check
        %p271 = pneg %p209
      $region42: #{tpu_custom_call.1} parent=11 // pred_check_branch
        %273 = sbr.rel (%p271) target = $region44
      $region43: #{tpu_custom_call.1} parent=11 // pred_region
        _
      $region44: #{tpu_custom_call.1} parent=11 // pred_fallthru
        _
    $region12: #{tpu_custom_call.1} parent=5 // pred_fallthru
      _
    %p274 = scmp.lt.s32.totalorder %s15, 2
    // Predicated region
    $region45: #{tpu_custom_call.1} parent=5 // pred_check
      %p275 = pneg %p274
    $region46: #{tpu_custom_call.1} parent=5 // pred_check_branch
      %277 = sbr.rel (%p275) target = $region48
    $region47: #{tpu_custom_call.1} parent=5 // pred_region
      // Predicated region
      $region49: #{tpu_custom_call.1} parent=47 // pred_check
        %p278 = pneg %p35
      $region50: #{tpu_custom_call.1} parent=47 // pred_check_branch
        %280 = sbr.rel (%p278) target = $region52
      $region51: #{tpu_custom_call.1} parent=47 // pred_region
        %p281 = scmp.lt.s32.totalorder %s15, 1
        %s282 = scalar_select %p281, %s15, 1
        %s283 = smul.addr %s282, 4
        %s284 = scalar_lea.vmem %s0, %s283
      $region52: #{tpu_custom_call.1} parent=47 // pred_fallthru
        _
    $region48: #{tpu_custom_call.1} parent=5 // pred_fallthru
      _
    %p285 = scmp.le.s32.totalorder 1, %s15
    %p286 = scmp.lt.s32.totalorder %s15, 3
    %p287 = pnand %p285, %p286
    %p288 = pneg %p287
    // Predicated region
    $region53: #{tpu_custom_call.1} parent=5 // pred_check
      _
    $region54: #{tpu_custom_call.1} parent=5 // pred_check_branch
      %290 = sbr.rel (%p287) target = $region56
    $region55: #{tpu_custom_call.1} parent=5 // pred_region
      %s291 = ssub.s32 %s15, 1
      %p292 = scmp.lt.s32.totalorder %s20, 1
      %s293 = scalar_select %p292, %s20, 1
      %s294 = smul.addr %s293, 4
      %s295 = scalar_lea.vmem %s0, %s294
      %p296 = pneg %p41
      %p297 = pneg %p38
      %p298 = pneg %p62
      %p299 = pneg %p59
      %p300 = pneg %p83
      %p301 = pneg %p80
      %p302 = pneg %p104
      %p303 = pneg %p101
      %p304 = pneg %p125
      %p305 = pneg %p122
      %p306 = pneg %p146
      %p307 = pneg %p143
      %p308 = pneg %p167
      %p309 = pneg %p164
      %p310 = pneg %p188
      %p311 = pneg %p185
      %p312 = pneg %p209
      %p313 = pneg %p206
      %p314 = pneg %p235
      %p315 = pneg %p232
      %p316 = scmp.lt.s32.totalorder %s20, 1
      %s317 = scalar_select %p316, %s20, 1
      %s318 = smul.addr %s317, 8
      %s319 = scalar_lea.vmem %s9, %s318
      %p320 = scmp.lt.s32.totalorder %s20, 1
      %s321 = scalar_select %p320, %s20, 1
      %s322 = smul.addr %s321, 4
      %s323 = scalar_lea.vmem %s0, %s322
      %p324 = scmp.lt.s32.totalorder %s20, 1
      %s325 = scalar_select %p324, %s20, 1
      %s326 = smul.addr %s325, 8
      %s327 = scalar_lea.vmem %s9, %s326
      %v328 = vld [vmem:[%s323] sm:$0xf]
      %v329 = vld [vmem:[%s1] sm:$0xff]
      %v330 = vld [vmem:[%s1 + $0x8] sm:$0x3f]
      %v331 = vld [vmem:[%s2] sm:$0xff]
      %v332 = vld [vmem:[%s2 + $0x8] sm:$0x3f]
      %334 = vset.pattern.permute.xlu0 0
      %335 = vperm.xlu0 %334, %v331
      %v336 = vpop.permute.xlu0 %335
      %339 = vset.pattern.permute.xlu0 0
      %340 = vperm.xlu0 %339, %v332
      %v341 = vpop.permute.xlu0 %340
      %vm343 = vcmask 31744
      %v345 = vsel %vm343, %v329, 0
      %v348 = vsel %vm343, %v330, 0
      %vm350 = vcmask 1043456
      %v352 = vsel %vm350, %v328, 0
      %354 = vmatprep.subr.mxu0 0.0
      %355 = vmatpush1.msra.mxu0 %v352
      %356 = vmatprep.subr.mxu0 0.0
      %357 = vmatpush1.msra.mxu0 0.0
      %358 = vmatprep.subr.mxu0 0.0
      %359 = vmatpush1.msra.mxu0 0.0
      %360 = vmatprep.subr.mxu0 0.0
      %361 = vmatpush1.msra.mxu0 0.0
      %362 = vmatprep.subr.mxu0 0.0
      %363 = vmatpush1.msra.mxu0 0.0
      %364 = vmatprep.subr.mxu0 0.0
      %365 = vmatpush1.msra.mxu0 0.0
      %366 = vmatprep.subr.mxu0 0.0
      %367 = vmatpush1.msra.mxu0 0.0
      %368 = vmatprep.subr.mxu0 0.0
      %369 = vmatpush1.msra.mxu0 0.0
      %370 = vmatprep.subr.mxu0 0.0
      %371 = vmatpush1.msra.mxu0 0.0
      %372 = vmatprep.subr.mxu0 0.0
      %373 = vmatpush1.msra.mxu0 0.0
      %374 = vmatprep.subr.mxu0 0.0
      %375 = vmatpush1.msra.mxu0 0.0
      %376 = vmatprep.subr.mxu0 0.0
      %377 = vmatpush1.msra.mxu0 0.0
      %378 = vmatprep.subr.mxu0 0.0
      %379 = vmatpush1.msra.mxu0 0.0
      %380 = vmatprep.subr.mxu0 0.0
      %381 = vmatpush1.msra.mxu0 0.0
      %382 = vmatprep.subr.mxu0 0.0
      %383 = vmatpush1.msra.mxu0 0.0
      %384 = vmatprep.subr.mxu0 0.0
      %385 = vmatpush1.msra.mxu0 0.0
      %386 = vmatprep.subr.mxu0 0.0
      %387 = vmatpush1.msra.mxu0 0.0
      %388 = vmatprep.subr.mxu0 0.0
      %389 = vmatpush1.msra.mxu0 0.0
      %390 = vmatprep.subr.mxu0 0.0
      %391 = vmatpush1.msra.mxu0 0.0
      %392 = vmatprep.subr.mxu0 0.0
      %393 = vmatpush1.msra.mxu0 0.0
      %394 = vmatprep.subr.mxu0 0.0
      %395 = vmatpush1.msra.mxu0 0.0
      %396 = vmatprep.subr.mxu0 0.0
      %397 = vmatpush1.msra.mxu0 0.0
      %398 = vmatprep.subr.mxu0 0.0
      %399 = vmatpush1.msra.mxu0 0.0
      %400 = vmatprep.subr.mxu0 0.0
      %401 = vmatpush1.msra.mxu0 0.0
      %402 = vmatprep.subr.mxu0 0.0
      %403 = vmatpush1.msra.mxu0 0.0
      %404 = vmatprep.subr.mxu0 0.0
      %405 = vmatpush1.msra.mxu0 0.0
      %406 = vmatprep.subr.mxu0 0.0
      %407 = vmatpush1.msra.mxu0 0.0
      %408 = vmatprep.subr.mxu0 0.0
      %409 = vmatpush1.msra.mxu0 0.0
      %410 = vmatprep.subr.mxu0 0.0
      %411 = vmatpush1.msra.mxu0 0.0
      %412 = vmatprep.subr.mxu0 0.0
      %413 = vmatpush1.msra.mxu0 0.0
      %414 = vmatprep.subr.mxu0 0.0
      %415 = vmatpush1.msra.mxu0 0.0
      %416 = vmatprep.subr.mxu0 0.0
      %417 = vmatpush1.msra.mxu0 0.0
      %418 = vmatprep.mubr.f32.mxu0 0.0
      %419 = vmatmul.mubr.f32.gmra.mrb[0].mxu0 %v345
      %v420 = vpop.f32.mrb[0].mxu0
      %v421 = vadd.f32 %v336, %v420
      %v422 = vpop.f32.mrb[0].mxu0
      %423 = vmatprep.mubr.f32.mxu0 0.0
      %424 = vmatmul.mubr.f32.gmra.mrb[0].mxu0 %v348
      %v425 = vpop.f32.mrb[0].mxu0
      %v426 = vadd.f32 %v341, %v425
      %v427 = vpop.f32.mrb[0].mxu0
      %428 = vdwg.mxu0
      %v429 = vld [vmem:[%s3] sm:$0xff]
      %v430 = vld [vmem:[%s4] sm:$0xff]
      %431 = vadd.xlane.f32.xlu0 %v421
      %v432 = vpop.xlane.xlu0 %431
      %v433 = vrot.slane %v432, 4
      %v434 = vadd.f32 %v432, %v433
      %v435 = vrot.slane %v434, 2
      %v436 = vadd.f32 %v434, %v435
      %v437 = vrot.slane %v436, 1
      %v438 = vadd.f32 %v436, %v437
      %s439 = vtos %v438
      %v440 = vmul.f32 %v421, %v421
      %441 = vadd.xlane.f32.xlu0 %v440
      %v442 = vpop.xlane.xlu0 %441
      %v443 = vrot.slane %v442, 4
      %v444 = vadd.f32 %v442, %v443
      %v445 = vrot.slane %v444, 2
      %v446 = vadd.f32 %v444, %v445
      %v447 = vrot.slane %v446, 1
      %v448 = vadd.f32 %v446, %v447
      %s449 = vtos %v448
      %s450 = smul.f32 %s439, 0.0009765625
      %s451 = smul.f32 %s449, 0.0009765625
      %s452 = smul.f32 %s450, %s450
      %s453 = ssub.f32 %s451, %s452
      %s454 = smax.f32 %s453, 0.0
      %s455 = sadd.f32 %s454, 1e-05
      %v456 = vstv %s455
      %v457 = vrsqrt.pop %v456
      %s458 = vtos %v457
      %v459 = vstv %s450
      %v460 = vsub.f32 %v421, %v459
      %v461 = vstv %s458
      %v462 = vmul.f32 %v460, %v461
      %464 = vset.pattern.permute.xlu0 0
      %465 = vperm.xlu0 %464, %v429
      %v466 = vpop.permute.xlu0 %465
      %v468 = vmul.f32 %v462, %v466
      %470 = vset.pattern.permute.xlu0 0
      %471 = vperm.xlu0 %470, %v430
      %v472 = vpop.permute.xlu0 %471
      %v474 = vadd.f32 %v468, %v472
      %v475 = vmul.f32 %v474, 0.5
      %v476 = vmul.f32 %v474, 0.70710677
      %v477 = verf.f32.pop %v476
      %v478 = vadd.f32 %v477, 1.0
      %v479 = vmul.f32 %v475, %v478
      %v480 = vld [vmem:[%s5] sm:$0x3f]
      %v481 = vld [vmem:[%s6] sm:$0x3f]
      %483 = vset.pattern.permute.xlu0 0
      %484 = vperm.xlu0 %483, %v481
      %v485 = vpop.permute.xlu0 %484
      %vm487 = vcmask 64512
      %v489 = vsel %vm487, %v480, 0
      %491 = vmatprep.subr.mxu0 0.0
      %492 = vmatpush1.msra.mxu0 %v479
      %493 = vmatprep.subr.mxu0 0.0
      %494 = vmatpush1.msra.mxu0 0.0
      %495 = vmatprep.subr.mxu0 0.0
      %496 = vmatpush1.msra.mxu0 0.0
      %497 = vmatprep.subr.mxu0 0.0
      %498 = vmatpush1.msra.mxu0 0.0
      %499 = vmatprep.subr.mxu0 0.0
      %500 = vmatpush1.msra.mxu0 0.0
      %501 = vmatprep.subr.mxu0 0.0
      %502 = vmatpush1.msra.mxu0 0.0
      %503 = vmatprep.subr.mxu0 0.0
      %504 = vmatpush1.msra.mxu0 0.0
      %505 = vmatprep.subr.mxu0 0.0
      %506 = vmatpush1.msra.mxu0 0.0
      %507 = vmatprep.subr.mxu0 0.0
      %508 = vmatpush1.msra.mxu0 0.0
      %509 = vmatprep.subr.mxu0 0.0
      %510 = vmatpush1.msra.mxu0 0.0
      %511 = vmatprep.subr.mxu0 0.0
      %512 = vmatpush1.msra.mxu0 0.0
      %513 = vmatprep.subr.mxu0 0.0
      %514 = vmatpush1.msra.mxu0 0.0
      %515 = vmatprep.subr.mxu0 0.0
      %516 = vmatpush1.msra.mxu0 0.0
      %517 = vmatprep.subr.mxu0 0.0
      %518 = vmatpush1.msra.mxu0 0.0
      %519 = vmatprep.subr.mxu0 0.0
      %520 = vmatpush1.msra.mxu0 0.0
      %521 = vmatprep.subr.mxu0 0.0
      %522 = vmatpush1.msra.mxu0 0.0
      %523 = vmatprep.subr.mxu0 0.0
      %524 = vmatpush1.msra.mxu0 0.0
      %525 = vmatprep.subr.mxu0 0.0
      %526 = vmatpush1.msra.mxu0 0.0
      %527 = vmatprep.subr.mxu0 0.0
      %528 = vmatpush1.msra.mxu0 0.0
      %529 = vmatprep.subr.mxu0 0.0
      %530 = vmatpush1.msra.mxu0 0.0
      %531 = vmatprep.subr.mxu0 0.0
      %532 = vmatpush1.msra.mxu0 0.0
      %533 = vmatprep.subr.mxu0 0.0
      %534 = vmatpush1.msra.mxu0 0.0
      %535 = vmatprep.subr.mxu0 0.0
      %536 = vmatpush1.msra.mxu0 0.0
      %537 = vmatprep.subr.mxu0 0.0
      %538 = vmatpush1.msra.mxu0 0.0
      %539 = vmatprep.subr.mxu0 0.0
      %540 = vmatpush1.msra.mxu0 0.0
      %541 = vmatprep.subr.mxu0 0.0
      %542 = vmatpush1.msra.mxu0 0.0
      %543 = vmatprep.subr.mxu0 0.0
      %544 = vmatpush1.msra.mxu0 0.0
      %545 = vmatprep.subr.mxu0 0.0
      %546 = vmatpush1.msra.mxu0 0.0
      %547 = vmatprep.subr.mxu0 0.0
      %548 = vmatpush1.msra.mxu0 0.0
      %549 = vmatprep.subr.mxu0 0.0
      %550 = vmatpush1.msra.mxu0 0.0
      %551 = vmatprep.subr.mxu0 0.0
      %552 = vmatpush1.msra.mxu0 0.0
      %553 = vmatprep.subr.mxu0 0.0
      %554 = vmatpush1.msra.mxu0 0.0
      %555 = vmatprep.mubr.f32.mxu0 0.0
      %556 = vmatmul.mubr.f32.gmra.mrb[0].mxu0 %v489
      %v557 = vpop.f32.mrb[0].mxu0
      %v558 = vadd.f32 %v485, %v557
      %v559 = vpop.f32.mrb[0].mxu0
      %560 = vdwg.mxu0
      %v561 = vld [vmem:[%s7] sm:$0x3f]
      %v562 = vld [vmem:[%s8] sm:$0x3f]
      %vm563 = vcmask 1045504
      %v564 = vsel %vm563, %v558, 0.0
      %565 = vadd.xlane.f32.xlu0 %v564
      %v566 = vpop.xlane.xlu0 %565
      %v567 = vrot.slane %v566, 4
      %v568 = vadd.f32 %v566, %v567
      %v569 = vrot.slane %v568, 2
      %v570 = vadd.f32 %v568, %v569
      %v571 = vrot.slane %v570, 1
      %v572 = vadd.f32 %v570, %v571
      %s573 = vtos %v572
      %v574 = vmul.f32 %v558, %v558
      %v575 = vsel %vm563, %v574, 0.0
      %576 = vadd.xlane.f32.xlu0 %v575
      %v577 = vpop.xlane.xlu0 %576
      %v578 = vrot.slane %v577, 4
      %v579 = vadd.f32 %v577, %v578
      %v580 = vrot.slane %v579, 2
      %v581 = vadd.f32 %v579, %v580
      %v582 = vrot.slane %v581, 1
      %v583 = vadd.f32 %v581, %v582
      %s584 = vtos %v583
      %s585 = smul.f32 %s573, 0.0013020834
      %s586 = smul.f32 %s584, 0.0013020834
      %s587 = smul.f32 %s585, %s585
      %s588 = ssub.f32 %s586, %s587
      %s589 = smax.f32 %s588, 0.0
      %s590 = sadd.f32 %s589, 1e-05
      %v591 = vstv %s590
      %v592 = vrsqrt.pop %v591
      %s593 = vtos %v592
      %v594 = vstv %s585
      %v595 = vsub.f32 %v558, %v594
      %v596 = vstv %s593
      %v597 = vmul.f32 %v595, %v596
      %599 = vset.pattern.permute.xlu0 0
      %600 = vperm.xlu0 %599, %v561
      %v601 = vpop.permute.xlu0 %600
      %v603 = vmul.f32 %v597, %v601
      %605 = vset.pattern.permute.xlu0 0
      %606 = vperm.xlu0 %605, %v562
      %v607 = vpop.permute.xlu0 %606
      %v609 = vadd.f32 %v603, %v607
      %v610 = vmul.f32 %v609, 0.5
      %v611 = vmul.f32 %v609, 0.70710677
      %v612 = verf.f32.pop %v611
      %v613 = vadd.f32 %v612, 1.0
      %v614 = vmul.f32 %v610, %v613
      %v615 = vadd.f32 %v614, %v426
      %616 = vst [vmem:[%s327] sm:$0x3f] %v615
      %p617 = scmp.lt.s32.totalorder %s20, 1
      %s618 = scalar_select %p617, %s20, 1
      %s619 = smul.addr %s618, 8
      %s620 = scalar_lea.vmem %s9, %s619
      // Predicated region
      $region57: #{tpu_custom_call.1} parent=55 // pred_check
        %p621 = pneg %p232
      $region58: #{tpu_custom_call.1} parent=55 // pred_check_branch
        %623 = sbr.rel (%p621) target = $region60
      $region59: #{tpu_custom_call.1} parent=55 // pred_region
        _
      $region60: #{tpu_custom_call.1} parent=55 // pred_fallthru
        _
    $region56: #{tpu_custom_call.1} parent=5 // pred_fallthru
      _
    %p624 = scmp.le.s32.totalorder 2, %s15
    // Predicated region
    $region61: #{tpu_custom_call.1} parent=5 // pred_check
      %p625 = pneg %p624
    $region62: #{tpu_custom_call.1} parent=5 // pred_check_branch
      %627 = sbr.rel (%p625) target = $region64
    $region63: #{tpu_custom_call.1} parent=5 // pred_region
      %s628 = ssub.s32 %s15, 2
      // Predicated region
      $region65: #{tpu_custom_call.1} parent=63 // pred_check
        %p629 = pneg %p238
      $region66: #{tpu_custom_call.1} parent=63 // pred_check_branch
        %631 = sbr.rel (%p629) target = $region68
      $region67: #{tpu_custom_call.1} parent=63 // pred_region
        %p632 = scmp.lt.s32.totalorder %s21, 1
        %s633 = scalar_select %p632, %s21, 1
        %s634 = smul.addr %s633, 8
        %s635 = scalar_lea.vmem %s9, %s634
      $region68: #{tpu_custom_call.1} parent=63 // pred_fallthru
        _
    $region64: #{tpu_custom_call.1} parent=5 // pred_fallthru
      _
  $region6: #{tpu_custom_call.1} parent=0 // loop_footer
    %s19 = sadd.s32 1, %s15
  $region7: #{tpu_custom_call.1} parent=0 // loop_footer_branch
    %14 = sbr.rel target = $region3
  $region8: #{tpu_custom_call.1} parent=0 // loop_exit
    _

</llo_original>
